<compile_context>
chip_gen: v7x
topology: tpu7x:2x2x1
jax: 0.10.0
libtpu: 0.0.40
codegen_flags: <defaults>
</compile_context>

<pallas_src>
import functools

import jax
import jax.numpy as jnp
from jax.experimental import pallas as pl
from jax.experimental.pallas import tpu as pltpu


def _round_up(x, m):
    return (x + m - 1) // m * m


def _mla_kernel(len_ref, x_ref, w_ref, o_ref, *, mm_dtype):
    # len_ref: (1, 1, B) int32  -- valid tokens per example in this block
    # x_ref:   (B, L_pad, D_pad) hidden states
    # w_ref:   (D_pad, C_pad)    pre-transposed, zero-padded weight (VMEM-resident)
    # o_ref:   (B, C_pad, D_pad) pooled outputs
    B, L, D = x_ref.shape
    C = w_ref.shape[1]

    x = x_ref[...]                                             # (B, L, D)
    w_t = w_ref[...]                                           # (D, C)

    # Scores for the whole block in one MXU pass:
    #   att[b, l, c] = sum_d x[b, l, d] * W[c, d]
    att = jnp.dot(x.reshape(B * L, D).astype(mm_dtype),
                  w_t.astype(mm_dtype),
                  preferred_element_type=jnp.float32).reshape(B, L, C)

    # Padding mask built from per-example lengths: position l valid iff l < len.
    lens = len_ref[0, 0, :]                                    # (B,) int32
    pos = jax.lax.broadcasted_iota(jnp.int32, (B, L, 1), 1)    # (B, L, 1)
    valid = pos < lens[:, None, None]                          # (B, L, 1) bool
    att = jnp.where(valid, att, -jnp.inf)                      # (B, L, C)

    # Softmax over the sequence axis (PyTorch dim=1), batched over B.
    m = jnp.max(att, axis=1, keepdims=True)                    # (B, 1, C)
    # Guard fully-masked (batch-padding) rows so exp/denom stay finite -> zeros.
    m = jnp.maximum(m, jnp.float32(-3.0e38))
    e = jnp.exp(att - m)                                       # (B, L, C)
    denom = jnp.sum(e, axis=1, keepdims=True)                  # (B, 1, C)
    denom = jnp.maximum(denom, jnp.float32(1e-30))
    # Fold the denominator into the probabilities (lane-broadcast multiply);
    # no per-example transpose of the reciprocal is needed.
    p = e * pl.reciprocal(denom, approx=False)                 # (B, L, C)

    # out[b, c, d] = sum_l p[b, l, c] * x[b, l, d]  (batched over B, contract L).
    out = jax.lax.dot_general(
        p.astype(mm_dtype), x.astype(mm_dtype),
        dimension_numbers=(((1,), (1,)), ((0,), (0,))),
        preferred_element_type=jnp.float32)                    # (B, C, D)
    o_ref[...] = out.astype(o_ref.dtype)                       # one block-wide store


def ml_attention(inputs, weight, lengths=None, *,
                 vmem_budget_bytes=None, max_block_batch=64,
                 matmul_dtype=None):
    """Multi-label attention pooling.

    inputs:  (N, L, D)  hidden states
    weight:  (C, D)     nn.Linear(hidden_size, num_labels, bias=False).weight
    lengths: (N,) int32 valid tokens per example (prefix padding mask); None = all L
    matmul_dtype: optional dtype (e.g. jnp.bfloat16) for the two MXU matmuls
    returns: (N, C, D)
    """
    N, L, D = inputs.shape
    C = weight.shape[0]
    dtype = inputs.dtype
    itemsize = jnp.dtype(dtype).itemsize
    mm_dtype = jnp.dtype(matmul_dtype) if matmul_dtype is not None else jnp.dtype(dtype)

    if lengths is None:
        lengths = jnp.full((N,), L, dtype=jnp.int32)
    lengths = lengths.astype(jnp.int32)

    # ---- lane/sublane-aligned padded shapes --------------------------------
    L_pad = _round_up(L, 8)                      # sublane-aligned sequence axis
    D_pad = _round_up(D, 128)                    # lane dim of x and out blocks
    C_pad = _round_up(max(C, 128), 128)          # lane dim of scores, MXU N dim

    if (L_pad, D_pad) != (L, D):
        # Extra L rows are masked out (lengths <= L); extra D cols are zeros
        # through both matmuls, so correctness is unchanged.
        inputs = jnp.pad(inputs, ((0, 0), (0, L_pad - L), (0, D_pad - D)))

    # Pre-transposed, zero-padded weight (D_pad, C_pad); constant index_map
    # keeps it resident in VMEM across all grid steps.
    w_t = jnp.pad(weight, ((0, C_pad - C), (0, D_pad - D))).T.astype(mm_dtype)

    # ---- VMEM-budgeted block batch B ---------------------------------------
    try:
        vmem_cap = int(pltpu.get_tpu_info().vmem_capacity_bytes)
    except Exception:                            # pragma: no cover
        vmem_cap = 64 * 1024 * 1024              # conservative (v7x)
    if vmem_budget_bytes is None:
        vmem_budget_bytes = min(24 * 1024 * 1024, vmem_cap // 4)

    # Double-buffered x and out blocks + f32 in-kernel temporaries, per example.
    per_ex = (2 * L_pad * D_pad + 2 * C_pad * D_pad) * itemsize \
             + (2 * L_pad * C_pad + C_pad * D_pad) * 4
    fixed = D_pad * C_pad * jnp.dtype(mm_dtype).itemsize     # resident weight (1 copy)
    B = int(max(1, min(N, max_block_batch,
                       (vmem_budget_bytes - fixed) // max(per_ex, 1))))
    # Keep >= ~8 grid steps (>= 4 per v7x TensorCore) so the BlockSpec
    # double-buffering overlaps DMA with compute.
    B = min(B, max(1, pl.cdiv(N, 8)))

    N_pad = _round_up(N, B)
    if N_pad != N:
        inputs = jnp.pad(inputs, ((0, N_pad - N), (0, 0), (0, 0)))
        lengths = jnp.pad(lengths, ((0, N_pad - N),))  # length 0 -> fully masked -> zeros
    grid = N_pad // B
    lengths_blk = lengths.reshape(grid, 1, B)          # (1,1,B) VMEM block per step

    vmem_limit = int(min(vmem_cap * 3 // 4,
                         max(32 * 1024 * 1024, fixed + B * per_ex + (8 << 20))))

    kernel = functools.partial(_mla_kernel, mm_dtype=mm_dtype)

    out = pl.pallas_call(
        kernel,
        out_shape=jax.ShapeDtypeStruct((N_pad, C_pad, D_pad), dtype),
        grid=(grid,),
        in_specs=[
            pl.BlockSpec((1, 1, B), lambda n: (n, 0, 0)),            # lengths
            pl.BlockSpec((B, L_pad, D_pad), lambda n: (n, 0, 0)),    # inputs
            pl.BlockSpec((D_pad, C_pad), lambda n: (0, 0)),          # weight (resident)
        ],
        out_specs=pl.BlockSpec((B, C_pad, D_pad), lambda n: (n, 0, 0)),
        compiler_params=pltpu.CompilerParams(
            dimension_semantics=("parallel",),
            vmem_limit_bytes=vmem_limit),
    )(lengths_blk, inputs, w_t)

    return out[:N, :C, :D]


def ml_attention_ref(inputs, masks, weight):
    """Pure-JAX reference mirroring the PyTorch forward."""
    att_s = jnp.einsum('nld,cd->nlc', inputs, weight)
    att_s = jnp.where(masks[..., None], att_s, -jnp.inf)
    p = jax.nn.softmax(att_s, axis=1)
    return jnp.einsum('nld,nlc->ncd', inputs, p)


if __name__ == "__main__":
    N, L, D, C = 4, 8, 32, 4          # batch, seq_len, hidden_size, num_labels

    key = jax.random.PRNGKey(0)
    k_x, k_w = jax.random.split(key)
    inputs = jax.random.normal(k_x, (N, L, D), dtype=jnp.float32)

    # Module's reset_parameters() zeros the weight (-> uniform attention);
    # use small deterministic random weights so the kernel math is exercised.
    weight = 0.05 * jax.random.normal(k_w, (C, D), dtype=jnp.float32)

    # Variable-length padding masks via per-example lengths.
    lengths = jnp.array([8, 5, 3, 8], dtype=jnp.int32)
    masks = jnp.arange(L)[None, :] < lengths[:, None]   # (N, L) bool

    out = ml_attention(inputs, weight, lengths=lengths)
    out = jax.block_until_ready(out)

    ref = ml_attention_ref(inputs, masks, weight)
    assert out.shape == (N, C, D)
    assert jnp.allclose(out, ref, atol=1e-5, rtol=1e-5), "mismatch vs reference"

    print("KERNEL_OK")
</pallas_src>

<mosaic_0001>
module attributes {stable_mosaic.version = 11 : i64} {
  func.func @_mla_kernel(%arg0: i32, %arg1: memref<1x1x1xi32, #tpu.memory_space<vmem>>, %arg2: memref<1x8x128xf32, #tpu.memory_space<vmem>>, %arg3: memref<128x128xf32, #tpu.memory_space<vmem>>, %arg4: memref<1x128x128xf32, #tpu.memory_space<vmem>>) attributes {dimension_semantics = [#tpu.dimension_semantics<parallel>], iteration_bounds = array<i64: 4>, scalar_prefetch = 0 : i64, scratch_operands = 0 : i64, tpu.core_type = #tpu.core_type<tc>, window_params = [{transform_indices = @transform_0, window_bounds = array<i64: 1, 1, 1>}, {transform_indices = @transform_1, window_bounds = array<i64: 1, 8, 128>}, {pipeline_mode = #tpu.pipeline_mode<synchronous>, transform_indices = @transform_2, window_bounds = array<i64: 128, 128>}, {transform_indices = @transform_3, window_bounds = array<i64: 1, 128, 128>}]} {
    %c0 = arith.constant 0 : index
    %c0_0 = arith.constant 0 : index
    %c0_1 = arith.constant 0 : index
    %0 = vector.load %arg2[%c0, %c0_0, %c0_1] : memref<1x8x128xf32, #tpu.memory_space<vmem>>, vector<1x8x128xf32>
    %c0_2 = arith.constant 0 : index
    %c0_3 = arith.constant 0 : index
    %1 = vector.load %arg3[%c0_2, %c0_3] : memref<128x128xf32, #tpu.memory_space<vmem>>, vector<128x128xf32>
    %2 = vector.shape_cast %0 : vector<1x8x128xf32> to vector<8x128xf32>
    %cst = arith.constant dense<0.000000e+00> : vector<8x128xf32>
    %3 = tpu.matmul %2, %1, %cst {dimension_numbers = #tpu.dot_dimension_numbers<[1], [0], [0], [1], [0, 0, 1, 1], [], []>} : vector<8x128xf32>, vector<128x128xf32>, vector<8x128xf32> -> vector<8x128xf32>
    %4 = vector.shape_cast %3 : vector<8x128xf32> to vector<1x8x128xf32>
    %c0_4 = arith.constant 0 : index
    %c0_5 = arith.constant 0 : index
    %c0_6 = arith.constant 0 : index
    %5 = vector.load %arg1[%c0_4, %c0_5, %c0_6] : memref<1x1x1xi32, #tpu.memory_space<vmem>>, vector<1x1x1xi32>
    %6 = vector.shape_cast %5 : vector<1x1x1xi32> to vector<1xi32>
    %7 = tpu.iota {dimensions = array<i32: 1>} : vector<1x8x1xi32>
    %8 = vector.shape_cast %6 : vector<1xi32> to vector<1x1x1xi32>
    %9 = vector.broadcast %8 : vector<1x1x1xi32> to vector<1x8x1xi32>
    %10 = arith.cmpi slt, %7, %9 : vector<1x8x1xi32>
    %cst_7 = arith.constant 0xFF800000 : f32
    %11 = vector.shape_cast %10 : vector<1x8x1xi1> to vector<1x8x1xi1>
    %12 = vector.broadcast %11 : vector<1x8x1xi1> to vector<1x8x128xi1>
    %13 = vector.broadcast %cst_7 : f32 to vector<1x8x128xf32>
    %14 = arith.select %12, %4, %13 : vector<1x8x128xi1>, vector<1x8x128xf32>
    %cst_8 = arith.constant dense<0xFF800000> : vector<1x128xf32>
    %15 = vector.multi_reduction <maximumf>, %14, %cst_8 [1] : vector<1x8x128xf32> to vector<1x128xf32>
    %16 = vector.shape_cast %15 : vector<1x128xf32> to vector<1x1x128xf32>
    %cst_9 = arith.constant -3.000000e+38 : f32
    %17 = vector.broadcast %cst_9 : f32 to vector<1x1x128xf32>
    %18 = arith.maximumf %16, %17 : vector<1x1x128xf32>
    %19 = vector.broadcast %18 : vector<1x1x128xf32> to vector<1x8x128xf32>
    %20 = arith.subf %14, %19 : vector<1x8x128xf32>
    %21 = math.exp %20 : vector<1x8x128xf32>
    %cst_10 = arith.constant dense<0.000000e+00> : vector<1x128xf32>
    %22 = vector.multi_reduction <add>, %21, %cst_10 [1] : vector<1x8x128xf32> to vector<1x128xf32>
    %23 = vector.shape_cast %22 : vector<1x128xf32> to vector<1x1x128xf32>
    %cst_11 = arith.constant 1.000000e-30 : f32
    %24 = vector.broadcast %cst_11 : f32 to vector<1x1x128xf32>
    %25 = arith.maximumf %23, %24 : vector<1x1x128xf32>
    %26 = tpu.reciprocal %25 : vector<1x1x128xf32> -> vector<1x1x128xf32>
    %27 = vector.broadcast %26 : vector<1x1x128xf32> to vector<1x8x128xf32>
    %28 = arith.mulf %21, %27 : vector<1x8x128xf32>
    %cst_12 = arith.constant dense<0.000000e+00> : vector<1x128x128xf32>
    %29 = tpu.matmul %28, %0, %cst_12 {dimension_numbers = #tpu.dot_dimension_numbers<[1], [1], [2], [2], [0, 0, 0, 2, 1, 2], [0], [0]>} : vector<1x8x128xf32>, vector<1x8x128xf32>, vector<1x128x128xf32> -> vector<1x128x128xf32>
    %c0_13 = arith.constant 0 : index
    %c0_14 = arith.constant 0 : index
    %c0_15 = arith.constant 0 : index
    %30 = vector.load %arg4[%c0_13, %c0_14, %c0_15] : memref<1x128x128xf32, #tpu.memory_space<vmem>>, vector<1x128x128xf32>
    tpu.vector_store %arg4[%c0_13, %c0_14, %c0_15], %29 {strides = array<i32>} : memref<1x128x128xf32, #tpu.memory_space<vmem>>, vector<1x128x128xf32>,
    return
  }
  func.func @transform_0(%arg0: i32) -> (i32, i32, i32) {
    %c0_i32 = arith.constant 0 : i32
    %c0_i32_0 = arith.constant 0 : i32
    %c0_i32_1 = arith.constant 0 : i32
    return %arg0, %c0_i32, %c0_i32_0 : i32, i32, i32
  }
  func.func @transform_1(%arg0: i32) -> (i32, i32, i32) {
    %c0_i32 = arith.constant 0 : i32
    %c0_i32_0 = arith.constant 0 : i32
    %c0_i32_1 = arith.constant 0 : i32
    return %arg0, %c0_i32, %c0_i32_0 : i32, i32, i32
  }
  func.func @transform_2(%arg0: i32) -> (i32, i32) {
    %c0_i32 = arith.constant 0 : i32
    %c0_i32_0 = arith.constant 0 : i32
    %c0_i32_1 = arith.constant 0 : i32
    return %c0_i32, %c0_i32_0 : i32, i32
  }
  func.func @transform_3(%arg0: i32) -> (i32, i32, i32) {
    %c0_i32 = arith.constant 0 : i32
    %c0_i32_0 = arith.constant 0 : i32
    %c0_i32_1 = arith.constant 0 : i32
    return %arg0, %c0_i32, %c0_i32_0 : i32, i32, i32
  }
}

</mosaic_0001>

<llo_original>
// kernel: tpu_custom_call.1
$region0: #{tpu_custom_call.1}
  #allocation0 [shape = 'u32[]', space=smem, size = 0x4, offset = 0x4, fixed_abs, tag = 'smem constant byte address 0x4 - core index']
  #allocation1 [shape = 'u32[144,128]{1,0:T(1,128)}', space=vmem, size = 0x12000, scoped, tag = 'internal scratch']
  %s0 = inlined_call_operand.vmem [shape: s32[4,1,1], index: 0, kind: input, shape index: {}]
  %s1 = inlined_call_operand.hbm [shape: f32[4,8,128], index: 1, kind: input, shape index: {}]
  %s2 = inlined_call_operand.hbm [shape: f32[128,128], index: 2, kind: input, shape index: {}]
  %s3 = inlined_call_operand.hbm [shape: f32[4,128,128], index: 3, kind: output, shape index: {}]
  %s4 = sld [smem:[#allocation0]]
  $region53: #{tpu_custom_call.1} parent=0
    _
  %s6 = ssub.s32 1, %s4
  %s7 = scalar_select 0, %s6, %s4
  $region1: #{tpu_custom_call.1} parent=0
    #allocation2 [shape = 'u8[8192]{0}', space=vmem, size = 0x2000, scoped, tag = 'input window, operand 1']
    #allocation3 [shape = 's32[2]{0}', space=sflag, size = 0x8, scoped, tag = 'scoped memory for tpu_custom_call.1']
    #allocation4 [shape = 's32[2]{0}', space=sflag, size = 0x8, scoped, tag = 'scoped memory for tpu_custom_call.1']
    #allocation5 [shape = 'u8[65536]{0}', space=vmem, size = 0x10000, scoped, tag = 'input window, operand 2, single buffered']
    #allocation6 [shape = 's32[1]{0}', space=sflag, size = 0x4, scoped, tag = 'scoped memory for tpu_custom_call.1']
    #allocation7 [shape = 'u8[131072]{0}', space=vmem, size = 0x20000, scoped, tag = 'output window, operand 0']
    %8 = vsyncpa [#allocation3], 0
    %s9 = scalar_lea.sflag [#allocation3], 1
    %10 = vsyncpa %s9, 0
    %11 = vsyncpa [#allocation6], 0
    %12 = vsyncpa [#allocation4], 0
    %s13 = scalar_lea.sflag [#allocation4], 1
    %14 = vsyncpa %s13, 0
    loop: start=0, step=1, limit=6
    $region2: #{tpu_custom_call.1} parent=1 // loop_pre_header
      _
    $region3: #{tpu_custom_call.1} parent=1 // loop_header
      %s16 = sphi 0, %s20
      %p17 = scmp.ge.s32.totalorder %s16, 6
      %s26 = sphi 0, %s28
      %s29 = sphi 0, %s26
      %s30 = sphi 0, %s29
      %s46 = sphi 0, %s30
      %s52 = sphi 0, %s54
      %s55 = sphi 0, %s52
      %s56 = sphi 0, %s55
      %s72 = sphi 0, %s56
      %s76 = sphi 0, %s76
      %s78 = sphi 0, %s76
      %s79 = sphi 0, %s78
      %s93 = sphi 0, %s79
      %s99 = sphi 0, %s101
      %s102 = sphi 0, %s99
      %s103 = sphi 0, %s102
      %s119 = sphi 0, %s103
    $region4: #{tpu_custom_call.1} parent=1 // loop_header_branch
      %19 = sbr.rel (%p17) target = $region8
    $region5: #{tpu_custom_call.1} parent=1 // loop_body
      %s21 = ssub.s32 %s16, 1
      %s22 = ssub.s32 %s16, 2
      %s23 = sadd.s32 %s16, 1
      %s24 = ssub.s32 %s16, %s23
      %p25 = scmp.eq.s32.totalorder %s24, 0
      %s27 = sadd.s32 %s26, 1
      %s28 = scalar_select %p25, %s26, %s27
      %p31 = pneg %p25
      %p32 = scmp.eq.s32.totalorder %s16, 3
      %p33 = por %p31, %p32
      %p34 = scmp.ne.s32.totalorder %s26, %s29
      %p35 = scmp.eq.s32.totalorder %s16, 0
      %p36 = por %p34, %p35
      %p37 = scmp.ne.s32.totalorder %s26, %s29
      %p38 = scmp.eq.s32.totalorder %s21, 3
      %p39 = por %p37, %p38
      %p40 = scmp.ne.s32.totalorder %s29, %s30
      %p41 = scmp.eq.s32.totalorder %s21, 0
      %p42 = por %p40, %p41
      %p43 = scmp.ne.s32.totalorder %s29, %s30
      %p44 = scmp.eq.s32.totalorder %s22, 3
      %p45 = por %p43, %p44
      %p47 = scmp.ne.s32.totalorder %s30, %s46
      %p48 = scmp.eq.s32.totalorder %s22, 0
      %p49 = por %p47, %p48
      %s50 = ssub.s32 %s16, %s23
      %p51 = scmp.eq.s32.totalorder %s50, 0
      %s53 = sadd.s32 %s52, 1
      %s54 = scalar_select %p51, %s52, %s53
      %p57 = pneg %p51
      %p58 = scmp.eq.s32.totalorder %s16, 3
      %p59 = por %p57, %p58
      %p60 = scmp.ne.s32.totalorder %s52, %s55
      %p61 = scmp.eq.s32.totalorder %s16, 0
      %p62 = por %p60, %p61
      %p63 = scmp.ne.s32.totalorder %s52, %s55
      %p64 = scmp.eq.s32.totalorder %s21, 3
      %p65 = por %p63, %p64
      %p66 = scmp.ne.s32.totalorder %s55, %s56
      %p67 = scmp.eq.s32.totalorder %s21, 0
      %p68 = por %p66, %p67
      %p69 = scmp.ne.s32.totalorder %s55, %s56
      %p70 = scmp.eq.s32.totalorder %s22, 3
      %p71 = por %p69, %p70
      %p73 = scmp.ne.s32.totalorder %s56, %s72
      %p74 = scmp.eq.s32.totalorder %s22, 0
      %p75 = por %p73, %p74
      %s77 = sadd.s32 %s76, 1
      %p80 = scmp.eq.s32.totalorder %s16, 3
      %p81 = scmp.ne.s32.totalorder %s76, %s78
      %p82 = scmp.eq.s32.totalorder %s16, 0
      %p83 = por %p81, %p82
      %p84 = scmp.ne.s32.totalorder %s76, %s78
      %p85 = scmp.eq.s32.totalorder %s21, 3
      %p86 = por %p84, %p85
      %p87 = scmp.ne.s32.totalorder %s78, %s79
      %p88 = scmp.eq.s32.totalorder %s21, 0
      %p89 = por %p87, %p88
      %p90 = scmp.ne.s32.totalorder %s78, %s79
      %p91 = scmp.eq.s32.totalorder %s22, 3
      %p92 = por %p90, %p91
      %p94 = scmp.ne.s32.totalorder %s79, %s93
      %p95 = scmp.eq.s32.totalorder %s22, 0
      %p96 = por %p94, %p95
      %s97 = ssub.s32 %s16, %s23
      %p98 = scmp.eq.s32.totalorder %s97, 0
      %s100 = sadd.s32 %s99, 1
      %s101 = scalar_select %p98, %s99, %s100
      %p104 = pneg %p98
      %p105 = scmp.eq.s32.totalorder %s16, 3
      %p106 = por %p104, %p105
      %p107 = scmp.ne.s32.totalorder %s99, %s102
      %p108 = scmp.eq.s32.totalorder %s16, 0
      %p109 = por %p107, %p108
      %p110 = scmp.ne.s32.totalorder %s99, %s102
      %p111 = scmp.eq.s32.totalorder %s21, 3
      %p112 = por %p110, %p111
      %p113 = scmp.ne.s32.totalorder %s102, %s103
      %p114 = scmp.eq.s32.totalorder %s21, 0
      %p115 = por %p113, %p114
      %p116 = scmp.ne.s32.totalorder %s102, %s103
      %p117 = scmp.eq.s32.totalorder %s22, 3
      %p118 = por %p116, %p117
      %p120 = scmp.ne.s32.totalorder %s103, %s119
      %p121 = scmp.eq.s32.totalorder %s22, 0
      %p122 = por %p120, %p121
      %p123 = scmp.le.s32.totalorder 1, %s16
      %p124 = scmp.lt.s32.totalorder %s16, 5
      %p125 = pnand %p123, %p124
      %p126 = pneg %p125
      // Predicated region
      $region9: #{tpu_custom_call.1} parent=5 // pred_check
        _
      $region10: #{tpu_custom_call.1} parent=5 // pred_check_branch
        %128 = sbr.rel (%p125) target = $region12
      $region11: #{tpu_custom_call.1} parent=5 // pred_region
        %s129 = ssub.s32 %s16, 1
        // Predicated region
        $region13: #{tpu_custom_call.1} parent=11 // pred_check
          %p130 = pneg %p89
        $region14: #{tpu_custom_call.1} parent=11 // pred_check_branch
          %132 = sbr.rel (%p130) target = $region16
        $region15: #{tpu_custom_call.1} parent=11 // pred_region
          %s134 = ssub.s32 2048, 2048
          %135 = vsyncadd [#allocation6], %s134
          %s136 = sshll.u32 [#allocation5], 4
          %s137 = int_to_ptr.vmem [resolvable:$true] %s136
          %142 = dma.hbm_to_vmem [thread:$0]  %s2, 2048, %s137, [#allocation6], 128, 128, 8
        $region16: #{tpu_custom_call.1} parent=11 // pred_fallthru
          _
      $region12: #{tpu_custom_call.1} parent=5 // pred_fallthru
        _
      %p143 = scmp.lt.s32.totalorder %s16, 4
      // Predicated region
      $region17: #{tpu_custom_call.1} parent=5 // pred_check
        %p144 = pneg %p143
      $region18: #{tpu_custom_call.1} parent=5 // pred_check_branch
        %146 = sbr.rel (%p144) target = $region20
      $region19: #{tpu_custom_call.1} parent=5 // pred_region
        // Predicated region
        $region21: #{tpu_custom_call.1} parent=19 // pred_check
          %p147 = pneg %p36
        $region22: #{tpu_custom_call.1} parent=19 // pred_check_branch
          %149 = sbr.rel (%p147) target = $region24
        $region23: #{tpu_custom_call.1} parent=19 // pred_region
          %p150 = scmp.lt.s32.totalorder %s16, 3
          %s151 = scalar_select %p150, %s16, 3
          %s152 = scalar_lea.vmem %s0, %s151
        $region24: #{tpu_custom_call.1} parent=19 // pred_fallthru
          _
        // Predicated region
        $region25: #{tpu_custom_call.1} parent=19 // pred_check
          %p153 = pneg %p62
        $region26: #{tpu_custom_call.1} parent=19 // pred_check_branch
          %155 = sbr.rel (%p153) target = $region28
        $region27: #{tpu_custom_call.1} parent=19 // pred_region
          %s156 = sand.u32 %s52, 1
          %s157 = scalar_lea.sflag [#allocation3], %s156
          %s158 = sand.u32 %s52, 1
          %s159 = smul.addr %s158, 8
          %s160 = scalar_lea.vmem [#allocation2], %s159
          %s162 = ssub.s32 128, 128
          %163 = vsyncadd %s157, %s162
          %s164 = smul.addr %s16, 128
          %s165 = scalar_lea.hbm %s1, %s164
          %s167 = sshll.u32 %s160, 4
          %s168 = int_to_ptr.vmem [resolvable:$true] %s167
          %170 = dma.hbm_to_vmem [thread:$0]  %s165, 128, %s168, %s157
        $region28: #{tpu_custom_call.1} parent=19 // pred_fallthru
          _
      $region20: #{tpu_custom_call.1} parent=5 // pred_fallthru
        _
      %p171 = scmp.le.s32.totalorder 1, %s16
      %p172 = scmp.lt.s32.totalorder %s16, 5
      %p173 = pnand %p171, %p172
      %p174 = pneg %p173
      // Predicated region
      $region29: #{tpu_custom_call.1} parent=5 // pred_check
        _
      $region30: #{tpu_custom_call.1} parent=5 // pred_check_branch
        %176 = sbr.rel (%p173) target = $region32
      $region31: #{tpu_custom_call.1} parent=5 // pred_region
        %s177 = ssub.s32 %s16, 1
        %s178 = sand.u32 %s55, 1
        %s179 = scalar_lea.sflag [#allocation3], %s178
        %s180 = sand.u32 %s55, 1
        %s181 = smul.addr %s180, 8
        %s182 = scalar_lea.vmem [#allocation2], %s181
        // Predicated region
        $region33: #{tpu_custom_call.1} parent=31 // pred_check
          %p183 = pneg %p68
        $region34: #{tpu_custom_call.1} parent=31 // pred_check_branch
          %185 = sbr.rel (%p183) target = $region36
        $region35: #{tpu_custom_call.1} parent=31 // pred_region
          %186 = dma.done %s179, 128
        $region36: #{tpu_custom_call.1} parent=31 // pred_fallthru
          _
        // Predicated region
        $region37: #{tpu_custom_call.1} parent=31 // pred_check
          %p187 = pneg %p89
        $region38: #{tpu_custom_call.1} parent=31 // pred_check_branch
          %189 = sbr.rel (%p187) target = $region40
        $region39: #{tpu_custom_call.1} parent=31 // pred_region
          %190 = dma.done [#allocation6], 2048
        $region40: #{tpu_custom_call.1} parent=31 // pred_fallthru
          _
        %p191 = scmp.lt.s32.totalorder %s21, 3
        %s192 = scalar_select %p191, %s21, 3
        %s193 = scalar_lea.vmem %s0, %s192
        %p194 = pneg %p42
        %p195 = pneg %p39
        %s196 = sand.u32 %s55, 1
        %s197 = scalar_lea.sflag [#allocation3], %s196
        %s198 = sand.u32 %s55, 1
        %s199 = smul.addr %s198, 8
        %s200 = scalar_lea.vmem [#allocation2], %s199
        %p201 = pneg %p68
        %p202 = pneg %p65
        %p203 = pneg %p89
        %p204 = pneg %p86
        %p205 = pneg %p115
        %p206 = pneg %p112
        %s207 = sand.u32 %s102, 1
        %s208 = scalar_lea.sflag [#allocation4], %s207
        %s209 = sand.u32 %s102, 1
        %s210 = smul.addr %s209, 128
        %s211 = scalar_lea.vmem [#allocation7], %s210
        %p212 = scmp.lt.s32.totalorder %s21, 3
        %s213 = scalar_select %p212, %s21, 3
        %s214 = scalar_lea.vmem %s0, %s213
        %v215 = vld [vmem:[%s182] sm:$0xff]
        %v216 = vld [vmem:[#allocation5] sm:$0xff]
        %v217 = vld [vmem:[#allocation5 + $0x8] sm:$0xff]
        %v218 = vld [vmem:[#allocation5 + $0x10] sm:$0xff]
        %v219 = vld [vmem:[#allocation5 + $0x18] sm:$0xff]
        %v220 = vld [vmem:[#allocation5 + $0x20] sm:$0xff]
        %v221 = vld [vmem:[#allocation5 + $0x28] sm:$0xff]
        %v222 = vld [vmem:[#allocation5 + $0x30] sm:$0xff]
        %v223 = vld [vmem:[#allocation5 + $0x38] sm:$0xff]
        %v224 = vld [vmem:[#allocation5 + $0x40] sm:$0xff]
        %v225 = vld [vmem:[#allocation5 + $0x48] sm:$0xff]
        %v226 = vld [vmem:[#allocation5 + $0x50] sm:$0xff]
        %v227 = vld [vmem:[#allocation5 + $0x58] sm:$0xff]
        %v228 = vld [vmem:[#allocation5 + $0x60] sm:$0xff]
        %v229 = vld [vmem:[#allocation5 + $0x68] sm:$0xff]
        %v230 = vld [vmem:[#allocation5 + $0x70] sm:$0xff]
        %v231 = vld [vmem:[#allocation5 + $0x78] sm:$0xff]
        %232 = vmatprep.subr.mxu0 0.0
        %233 = vmatpush1.msra.mxu0 %v216
        %234 = vmatprep.subr.mxu0 0.0
        %235 = vmatpush1.msra.mxu0 %v217
        %236 = vmatprep.subr.mxu0 0.0
        %237 = vmatpush1.msra.mxu0 %v218
        %238 = vmatprep.subr.mxu0 0.0
        %239 = vmatpush1.msra.mxu0 %v219
        %240 = vmatprep.subr.mxu0 0.0
        %241 = vmatpush1.msra.mxu0 %v220
        %242 = vmatprep.subr.mxu0 0.0
        %243 = vmatpush1.msra.mxu0 %v221
        %244 = vmatprep.subr.mxu0 0.0
        %245 = vmatpush1.msra.mxu0 %v222
        %246 = vmatprep.subr.mxu0 0.0
        %247 = vmatpush1.msra.mxu0 %v223
        %248 = vmatprep.subr.mxu0 0.0
        %249 = vmatpush1.msra.mxu0 %v224
        %250 = vmatprep.subr.mxu0 0.0
        %251 = vmatpush1.msra.mxu0 %v225
        %252 = vmatprep.subr.mxu0 0.0
        %253 = vmatpush1.msra.mxu0 %v226
        %254 = vmatprep.subr.mxu0 0.0
        %255 = vmatpush1.msra.mxu0 %v227
        %256 = vmatprep.subr.mxu0 0.0
        %257 = vmatpush1.msra.mxu0 %v228
        %258 = vmatprep.subr.mxu0 0.0
        %259 = vmatpush1.msra.mxu0 %v229
        %260 = vmatprep.subr.mxu0 0.0
        %261 = vmatpush1.msra.mxu0 %v230
        %262 = vmatprep.subr.mxu0 0.0
        %263 = vmatpush1.msra.mxu0 %v231
        %264 = vmatprep.subr.mxu0 0.0
        %265 = vmatpush1.msra.mxu0 0.0
        %266 = vmatprep.subr.mxu0 0.0
        %267 = vmatpush1.msra.mxu0 0.0
        %268 = vmatprep.subr.mxu0 0.0
        %269 = vmatpush1.msra.mxu0 0.0
        %270 = vmatprep.subr.mxu0 0.0
        %271 = vmatpush1.msra.mxu0 0.0
        %272 = vmatprep.subr.mxu0 0.0
        %273 = vmatpush1.msra.mxu0 0.0
        %274 = vmatprep.subr.mxu0 0.0
        %275 = vmatpush1.msra.mxu0 0.0
        %276 = vmatprep.subr.mxu0 0.0
        %277 = vmatpush1.msra.mxu0 0.0
        %278 = vmatprep.subr.mxu0 0.0
        %279 = vmatpush1.msra.mxu0 0.0
        %280 = vmatprep.subr.mxu0 0.0
        %281 = vmatpush1.msra.mxu0 0.0
        %282 = vmatprep.subr.mxu0 0.0
        %283 = vmatpush1.msra.mxu0 0.0
        %284 = vmatprep.subr.mxu0 0.0
        %285 = vmatpush1.msra.mxu0 0.0
        %286 = vmatprep.subr.mxu0 0.0
        %287 = vmatpush1.msra.mxu0 0.0
        %288 = vmatprep.subr.mxu0 0.0
        %289 = vmatpush1.msra.mxu0 0.0
        %290 = vmatprep.subr.mxu0 0.0
        %291 = vmatpush1.msra.mxu0 0.0
        %292 = vmatprep.subr.mxu0 0.0
        %293 = vmatpush1.msra.mxu0 0.0
        %294 = vmatprep.subr.mxu0 0.0
        %295 = vmatpush1.msra.mxu0 0.0
        %296 = vmatprep.mubr.f32.mxu0 0.0
        %297 = vmatmul.mubr.f32.gmra.mrb[0].mxu0 %v215
        %v298 = vpop.f32.mrb[0].mxu0
        %v299 = vadd.f32 0.0, %v298
        %v300 = vpop.f32.mrb[0].mxu0
        %301 = vdwg.mxu0
        %v302 = vld [vmem:[%s214] sm:$0x1]
        %v303 = vlaneseq
        %v304 = vshrl.u32 %v303, 7
        %v305 = vlaneseq
        %v306 = vshrl.u32 %v305, 7
        %v307 = vsub.s32 0, %v306
        %v308 = vrot.slane %v302, %v307
        %vm309 = vcmp.lt.s32.totalorder %v304, %v308
        %v310 = vsel %vm309, 1, 0
        %311 = vset.pattern.permute.xlu0 0
        %312 = vperm.xlu0 %311, %v310
        %v313 = vpop.permute.xlu0 %312
        %vm314 = vcmp.eq.s32.totalorder %v313, 1
        %v315 = vsel %vm314, %v299, -inf
        %v316 = vrot.slane %v315, 4
        %v317 = vmax.f32 %v315, %v316
        %v318 = vrot.slane %v317, 2
        %v319 = vmax.f32 %v317, %v318
        %v320 = vrot.slane %v319, 1
        %v321 = vmax.f32 %v319, %v320
        %v322 = vmax.f32 %v321, -3e+38
        %v323 = vsub.f32 %v315, %v322
        %v324 = vmul.f32 %v323, 1.442695
        %v325 = vpow.pop %v324
        %v326 = vrot.slane %v325, 4
        %v327 = vadd.f32 %v325, %v326
        %v328 = vrot.slane %v327, 2
        %v329 = vadd.f32 %v327, %v328
        %v330 = vrot.slane %v329, 1
        %v331 = vadd.f32 %v329, %v330
        %v332 = vmax.f32 %v331, 1e-30
        %v333 = vrcp.pop %v332
        %v334 = vmul.f32 %v325, %v333
        %335 = vxpose.xlu0.b32.start [1/16] %v334, 128
        %336 = vxpose.xlu0.b32.cont [2/16] 0.0, 128
        %337 = vxpose.xlu0.b32.cont [3/16] 0.0, 128
        %338 = vxpose.xlu0.b32.cont [4/16] 0.0, 128
        %339 = vxpose.xlu0.b32.cont [5/16] 0.0, 128
        %340 = vxpose.xlu0.b32.cont [6/16] 0.0, 128
        %341 = vxpose.xlu0.b32.cont [7/16] 0.0, 128
        %342 = vxpose.xlu0.b32.cont [8/16] 0.0, 128
        %343 = vxpose.xlu0.b32.cont [9/16] 0.0, 128
        %344 = vxpose.xlu0.b32.cont [10/16] 0.0, 128
        %345 = vxpose.xlu0.b32.cont [11/16] 0.0, 128
        %346 = vxpose.xlu0.b32.cont [12/16] 0.0, 128
        %347 = vxpose.xlu0.b32.cont [13/16] 0.0, 128
        %348 = vxpose.xlu0.b32.cont [14/16] 0.0, 128
        %349 = vxpose.xlu0.b32.cont [15/16] 0.0, 128
        %350 = vxpose.xlu0.b32.end [16/16] 0.0, 128
        %v351 = vpop.trf.xlu0
        %v352 = vpop.trf.xlu0
        %v353 = vpop.trf.xlu0
        %v354 = vpop.trf.xlu0
        %v355 = vpop.trf.xlu0
        %v356 = vpop.trf.xlu0
        %v357 = vpop.trf.xlu0
        %v358 = vpop.trf.xlu0
        %v359 = vpop.trf.xlu0
        %v360 = vpop.trf.xlu0
        %v361 = vpop.trf.xlu0
        %v362 = vpop.trf.xlu0
        %v363 = vpop.trf.xlu0
        %v364 = vpop.trf.xlu0
        %v365 = vpop.trf.xlu0
        %v366 = vpop.trf.xlu0
        %vm367 = vcmask 64512
        %v369 = vsel %vm367, %v351, 0
        %v372 = vsel %vm367, %v352, 0
        %v375 = vsel %vm367, %v353, 0
        %v378 = vsel %vm367, %v354, 0
        %v381 = vsel %vm367, %v355, 0
        %v384 = vsel %vm367, %v356, 0
        %v387 = vsel %vm367, %v357, 0
        %v390 = vsel %vm367, %v358, 0
        %v393 = vsel %vm367, %v359, 0
        %v396 = vsel %vm367, %v360, 0
        %v399 = vsel %vm367, %v361, 0
        %v402 = vsel %vm367, %v362, 0
        %v405 = vsel %vm367, %v363, 0
        %v408 = vsel %vm367, %v364, 0
        %v411 = vsel %vm367, %v365, 0
        %v414 = vsel %vm367, %v366, 0
        %416 = vmatprep.subr.mxu0 0.0
        %417 = vmatpush1.msra.mxu0 %v215
        %418 = vmatprep.subr.mxu0 0.0
        %419 = vmatpush1.msra.mxu0 0.0
        %420 = vmatprep.subr.mxu0 0.0
        %421 = vmatpush1.msra.mxu0 0.0
        %422 = vmatprep.subr.mxu0 0.0
        %423 = vmatpush1.msra.mxu0 0.0
        %424 = vmatprep.subr.mxu0 0.0
        %425 = vmatpush1.msra.mxu0 0.0
        %426 = vmatprep.subr.mxu0 0.0
        %427 = vmatpush1.msra.mxu0 0.0
        %428 = vmatprep.subr.mxu0 0.0
        %429 = vmatpush1.msra.mxu0 0.0
        %430 = vmatprep.subr.mxu0 0.0
        %431 = vmatpush1.msra.mxu0 0.0
        %432 = vmatprep.subr.mxu0 0.0
        %433 = vmatpush1.msra.mxu0 0.0
        %434 = vmatprep.subr.mxu0 0.0
        %435 = vmatpush1.msra.mxu0 0.0
        %436 = vmatprep.subr.mxu0 0.0
        %437 = vmatpush1.msra.mxu0 0.0
        %438 = vmatprep.subr.mxu0 0.0
        %439 = vmatpush1.msra.mxu0 0.0
        %440 = vmatprep.subr.mxu0 0.0
        %441 = vmatpush1.msra.mxu0 0.0
        %442 = vmatprep.subr.mxu0 0.0
        %443 = vmatpush1.msra.mxu0 0.0
        %444 = vmatprep.subr.mxu0 0.0
        %445 = vmatpush1.msra.mxu0 0.0
        %446 = vmatprep.subr.mxu0 0.0
        %447 = vmatpush1.msra.mxu0 0.0
        %448 = vmatprep.subr.mxu0 0.0
        %449 = vmatpush1.msra.mxu0 0.0
        %450 = vmatprep.subr.mxu0 0.0
        %451 = vmatpush1.msra.mxu0 0.0
        %452 = vmatprep.subr.mxu0 0.0
        %453 = vmatpush1.msra.mxu0 0.0
        %454 = vmatprep.subr.mxu0 0.0
        %455 = vmatpush1.msra.mxu0 0.0
        %456 = vmatprep.subr.mxu0 0.0
        %457 = vmatpush1.msra.mxu0 0.0
        %458 = vmatprep.subr.mxu0 0.0
        %459 = vmatpush1.msra.mxu0 0.0
        %460 = vmatprep.subr.mxu0 0.0
        %461 = vmatpush1.msra.mxu0 0.0
        %462 = vmatprep.subr.mxu0 0.0
        %463 = vmatpush1.msra.mxu0 0.0
        %464 = vmatprep.subr.mxu0 0.0
        %465 = vmatpush1.msra.mxu0 0.0
        %466 = vmatprep.subr.mxu0 0.0
        %467 = vmatpush1.msra.mxu0 0.0
        %468 = vmatprep.subr.mxu0 0.0
        %469 = vmatpush1.msra.mxu0 0.0
        %470 = vmatprep.subr.mxu0 0.0
        %471 = vmatpush1.msra.mxu0 0.0
        %472 = vmatprep.subr.mxu0 0.0
        %473 = vmatpush1.msra.mxu0 0.0
        %474 = vmatprep.subr.mxu0 0.0
        %475 = vmatpush1.msra.mxu0 0.0
        %476 = vmatprep.subr.mxu0 0.0
        %477 = vmatpush1.msra.mxu0 0.0
        %478 = vmatprep.subr.mxu0 0.0
        %479 = vmatpush1.msra.mxu0 0.0
        %480 = vmatprep.mubr.f32.mxu0 0.0
        %481 = vmatmul.mubr.f32.gmra.mrb[0].mxu0 %v369
        %v482 = vpop.f32.mrb[0].mxu0
        %v483 = vadd.f32 0.0, %v482
        %v484 = vpop.f32.mrb[0].mxu0
        %485 = vmatprep.mubr.f32.mxu0 0.0
        %486 = vmatmul.mubr.f32.gmra.mrb[0].mxu0 %v372
        %v487 = vpop.f32.mrb[0].mxu0
        %v488 = vadd.f32 0.0, %v487
        %v489 = vpop.f32.mrb[0].mxu0
        %490 = vmatprep.mubr.f32.mxu0 0.0
        %491 = vmatmul.mubr.f32.gmra.mrb[0].mxu0 %v375
        %v492 = vpop.f32.mrb[0].mxu0
        %v493 = vadd.f32 0.0, %v492
        %v494 = vpop.f32.mrb[0].mxu0
        %495 = vmatprep.mubr.f32.mxu0 0.0
        %496 = vmatmul.mubr.f32.gmra.mrb[0].mxu0 %v378
        %v497 = vpop.f32.mrb[0].mxu0
        %v498 = vadd.f32 0.0, %v497
        %v499 = vpop.f32.mrb[0].mxu0
        %500 = vmatprep.mubr.f32.mxu0 0.0
        %501 = vmatmul.mubr.f32.gmra.mrb[0].mxu0 %v381
        %v502 = vpop.f32.mrb[0].mxu0
        %v503 = vadd.f32 0.0, %v502
        %v504 = vpop.f32.mrb[0].mxu0
        %505 = vmatprep.mubr.f32.mxu0 0.0
        %506 = vmatmul.mubr.f32.gmra.mrb[0].mxu0 %v384
        %v507 = vpop.f32.mrb[0].mxu0
        %v508 = vadd.f32 0.0, %v507
        %v509 = vpop.f32.mrb[0].mxu0
        %510 = vmatprep.mubr.f32.mxu0 0.0
        %511 = vmatmul.mubr.f32.gmra.mrb[0].mxu0 %v387
        %v512 = vpop.f32.mrb[0].mxu0
        %v513 = vadd.f32 0.0, %v512
        %v514 = vpop.f32.mrb[0].mxu0
        %515 = vmatprep.mubr.f32.mxu0 0.0
        %516 = vmatmul.mubr.f32.gmra.mrb[0].mxu0 %v390
        %v517 = vpop.f32.mrb[0].mxu0
        %v518 = vadd.f32 0.0, %v517
        %v519 = vpop.f32.mrb[0].mxu0
        %520 = vmatprep.mubr.f32.mxu0 0.0
        %521 = vmatmul.mubr.f32.gmra.mrb[0].mxu0 %v393
        %v522 = vpop.f32.mrb[0].mxu0
        %v523 = vadd.f32 0.0, %v522
        %v524 = vpop.f32.mrb[0].mxu0
        %525 = vmatprep.mubr.f32.mxu0 0.0
        %526 = vmatmul.mubr.f32.gmra.mrb[0].mxu0 %v396
        %v527 = vpop.f32.mrb[0].mxu0
        %v528 = vadd.f32 0.0, %v527
        %v529 = vpop.f32.mrb[0].mxu0
        %530 = vmatprep.mubr.f32.mxu0 0.0
        %531 = vmatmul.mubr.f32.gmra.mrb[0].mxu0 %v399
        %v532 = vpop.f32.mrb[0].mxu0
        %v533 = vadd.f32 0.0, %v532
        %v534 = vpop.f32.mrb[0].mxu0
        %535 = vmatprep.mubr.f32.mxu0 0.0
        %536 = vmatmul.mubr.f32.gmra.mrb[0].mxu0 %v402
        %v537 = vpop.f32.mrb[0].mxu0
        %v538 = vadd.f32 0.0, %v537
        %v539 = vpop.f32.mrb[0].mxu0
        %540 = vmatprep.mubr.f32.mxu0 0.0
        %541 = vmatmul.mubr.f32.gmra.mrb[0].mxu0 %v405
        %v542 = vpop.f32.mrb[0].mxu0
        %v543 = vadd.f32 0.0, %v542
        %v544 = vpop.f32.mrb[0].mxu0
        %545 = vmatprep.mubr.f32.mxu0 0.0
        %546 = vmatmul.mubr.f32.gmra.mrb[0].mxu0 %v408
        %v547 = vpop.f32.mrb[0].mxu0
        %v548 = vadd.f32 0.0, %v547
        %v549 = vpop.f32.mrb[0].mxu0
        %550 = vmatprep.mubr.f32.mxu0 0.0
        %551 = vmatmul.mubr.f32.gmra.mrb[0].mxu0 %v411
        %v552 = vpop.f32.mrb[0].mxu0
        %v553 = vadd.f32 0.0, %v552
        %v554 = vpop.f32.mrb[0].mxu0
        %555 = vmatprep.mubr.f32.mxu0 0.0
        %556 = vmatmul.mubr.f32.gmra.mrb[0].mxu0 %v414
        %v557 = vpop.f32.mrb[0].mxu0
        %v558 = vadd.f32 0.0, %v557
        %v559 = vpop.f32.mrb[0].mxu0
        %560 = vdwg.mxu0
        %561 = vst [vmem:[%s211] sm:$0xff] %v483
        %562 = vst [vmem:[%s211 + $0x8] sm:$0xff] %v488
        %563 = vst [vmem:[%s211 + $0x10] sm:$0xff] %v493
        %564 = vst [vmem:[%s211 + $0x18] sm:$0xff] %v498
        %565 = vst [vmem:[%s211 + $0x20] sm:$0xff] %v503
        %566 = vst [vmem:[%s211 + $0x28] sm:$0xff] %v508
        %567 = vst [vmem:[%s211 + $0x30] sm:$0xff] %v513
        %568 = vst [vmem:[%s211 + $0x38] sm:$0xff] %v518
        %569 = vst [vmem:[%s211 + $0x40] sm:$0xff] %v523
        %570 = vst [vmem:[%s211 + $0x48] sm:$0xff] %v528
        %571 = vst [vmem:[%s211 + $0x50] sm:$0xff] %v533
        %572 = vst [vmem:[%s211 + $0x58] sm:$0xff] %v538
        %573 = vst [vmem:[%s211 + $0x60] sm:$0xff] %v543
        %574 = vst [vmem:[%s211 + $0x68] sm:$0xff] %v548
        %575 = vst [vmem:[%s211 + $0x70] sm:$0xff] %v553
        %576 = vst [vmem:[%s211 + $0x78] sm:$0xff] %v558
        %s577 = sand.u32 %s102, 1
        %s578 = scalar_lea.sflag [#allocation4], %s577
        %s579 = sand.u32 %s102, 1
        %s580 = smul.addr %s579, 128
        %s581 = scalar_lea.vmem [#allocation7], %s580
        // Predicated region
        $region41: #{tpu_custom_call.1} parent=31 // pred_check
          %p582 = pneg %p112
        $region42: #{tpu_custom_call.1} parent=31 // pred_check_branch
          %584 = sbr.rel (%p582) target = $region44
        $region43: #{tpu_custom_call.1} parent=31 // pred_region
          %s586 = ssub.s32 2048, 2048
          %587 = vsyncadd %s578, %s586
          %s588 = smul.addr %s21, 16
          %s589 = smul.addr %s588, 128
          %s590 = scalar_lea.hbm %s3, %s589
          %s591 = sshll.u32 %s581, 4
          %s592 = int_to_ptr.vmem [resolvable:$true] %s591
          %597 = dma.vmem_to_hbm [thread:$0]  %s592, 2048, %s590, %s578, 128, 128, 8
        $region44: #{tpu_custom_call.1} parent=31 // pred_fallthru
          _
      $region32: #{tpu_custom_call.1} parent=5 // pred_fallthru
        _
      %p598 = scmp.le.s32.totalorder 2, %s16
      // Predicated region
      $region45: #{tpu_custom_call.1} parent=5 // pred_check
        %p599 = pneg %p598
      $region46: #{tpu_custom_call.1} parent=5 // pred_check_branch
        %601 = sbr.rel (%p599) target = $region48
      $region47: #{tpu_custom_call.1} parent=5 // pred_region
        %s602 = ssub.s32 %s16, 2
        // Predicated region
        $region49: #{tpu_custom_call.1} parent=47 // pred_check
          %p603 = pneg %p118
        $region50: #{tpu_custom_call.1} parent=47 // pred_check_branch
          %605 = sbr.rel (%p603) target = $region52
        $region51: #{tpu_custom_call.1} parent=47 // pred_region
          %s606 = sand.u32 %s103, 1
          %s607 = scalar_lea.sflag [#allocation4], %s606
          %s608 = sand.u32 %s103, 1
          %s609 = smul.addr %s608, 128
          %s610 = scalar_lea.vmem [#allocation7], %s609
          %611 = dma.done %s607, 2048
        $region52: #{tpu_custom_call.1} parent=47 // pred_fallthru
          _
      $region48: #{tpu_custom_call.1} parent=5 // pred_fallthru
        _
    $region6: #{tpu_custom_call.1} parent=1 // loop_footer
      %s20 = sadd.s32 1, %s16
    $region7: #{tpu_custom_call.1} parent=1 // loop_footer_branch
      %15 = sbr.rel target = $region3
    $region8: #{tpu_custom_call.1} parent=1 // loop_exit
      _
    %612 = vsyncpa [#allocation3], 1
    %s613 = scalar_lea.sflag [#allocation3], 1
    %614 = vsyncpa %s613, 1
    %615 = vsyncpa [#allocation6], 1
    %616 = vsyncpa [#allocation4], 1
    %s617 = scalar_lea.sflag [#allocation4], 1
    %618 = vsyncpa %s617, 1

</llo_original>
